<compile_context>
chip_gen: v5e
topology: v5e:2x2
jax: 0.10.0
libtpu: 0.0.40
codegen_flags: <defaults>
</compile_context>

<pallas_src>
import functools

import jax
import jax.numpy as jnp
from jax.experimental import pallas as pl
from jax.experimental.pallas import tpu as pltpu

BN_EPS = 1e-5


def _round_up(n, m):
    return ((n + m - 1) // m) * m


def _mlp_kernel(num_hidden, matmul_dtype, *refs):
    # refs = [x, (W, b) * num_hidden, W_out, b_out, out]
    # BatchNorm (eval) is pre-folded into W/b in the wrapper; Dropout is identity.
    x_ref = refs[0]
    out_ref = refs[-1]
    params = refs[1:-1]

    h = x_ref[...]  # f32 activations (no redundant astype)
    idx = 0
    for _ in range(num_hidden):
        w_ref, b_ref = params[idx:idx + 2]
        idx += 2
        z = jnp.dot(h.astype(matmul_dtype), w_ref[...],
                    preferred_element_type=jnp.float32) + b_ref[...]
        h = jnp.maximum(z, 0.0)  # ReLU in f32

    w_ref, b_ref = params[idx:idx + 2]
    logits = jnp.dot(h.astype(matmul_dtype), w_ref[...],
                     preferred_element_type=jnp.float32) + b_ref[...]
    # Sigmoid: exp and reciprocal both go to the EUP slot (VALU stays free).
    out_ref[...] = pl.reciprocal(1.0 + jnp.exp(-logits), approx=True)


def prepare_params(raw_params, num_hidden, output_size, matmul_dtype=jnp.bfloat16):
    """Fold eval-mode BatchNorm1d into the *next* Linear layer and pad the output
    layer to a lane-dense (multiple of 128) width.

    raw_params layout (PyTorch semantics, weights already transposed to (in,out)):
      per hidden layer: W, b, gamma, beta, running_mean, running_var
      then: W_out, b_out
    Returns (flat folded params, padded output width)."""
    folded = []
    scale = None  # pending post-ReLU BN affine from the previous hidden layer
    shift = None
    idx = 0
    for _ in range(num_hidden):
        w, b, g, be, rm, rv = raw_params[idx:idx + 6]
        idx += 6
        if scale is not None:
            b = shift @ w + b          # (1,in) @ (in,out) + (1,out)
            w = scale.T * w            # scale each input row of W
        scale = g * jax.lax.rsqrt(rv + BN_EPS)   # (1, out)
        shift = be - rm * scale                  # (1, out)
        folded += [w.astype(matmul_dtype), b.astype(jnp.float32)]

    w, b = raw_params[idx:idx + 2]
    if scale is not None:
        b = shift @ w + b
        w = scale.T * w
    out_padded = _round_up(output_size, 128)
    pad = out_padded - output_size
    if pad:
        w = jnp.pad(w, ((0, 0), (0, pad)))
        b = jnp.pad(b, ((0, 0), (0, pad)))
    folded += [w.astype(matmul_dtype), b.astype(jnp.float32)]
    return folded, out_padded


def emotion_recommender_forward(x, folded_params, num_hidden, output_size,
                                out_padded, *, block_rows=1024):
    """x: (B, input_size) f32. folded_params: output of prepare_params."""
    B, f_in = x.shape
    tb = min(block_rows, _round_up(B, 8))          # batch tile (multiple of 8)
    b_pad = _round_up(B, tb)
    if b_pad != B:
        x = jnp.pad(x, ((0, b_pad - B), (0, 0)))

    matmul_dtype = folded_params[0].dtype
    kernel = functools.partial(_mlp_kernel, num_hidden, matmul_dtype)

    x_spec = pl.BlockSpec((tb, f_in), lambda i: (i, 0))
    w_specs = [pl.BlockSpec(p.shape, lambda i: (0, 0)) for p in folded_params]
    out_spec = pl.BlockSpec((tb, out_padded), lambda i: (i, 0))

    out = pl.pallas_call(
        kernel,
        out_shape=jax.ShapeDtypeStruct((b_pad, out_padded), jnp.float32),
        grid=(b_pad // tb,),
        in_specs=[x_spec] + w_specs,
        out_specs=out_spec,
        compiler_params=pltpu.CompilerParams(
            dimension_semantics=("parallel",)),   # shard batch tiles across TCs (v7x)
    )(x, *folded_params)
    return out[:B, :output_size]


def init_params(key, input_size, hidden_sizes, output_size):
    """Deterministic init. Linear: U(-1/sqrt(in), 1/sqrt(in)) (PyTorch default),
    weights stored transposed as (in, out); BatchNorm stats randomized so the
    BN-folding path is actually exercised. 1-D vectors reshaped to (1, F)."""
    params = []
    prev = input_size
    for h in hidden_sizes:
        key, kw, kb, kg, kbe, km, kv = jax.random.split(key, 7)
        bound = 1.0 / (prev ** 0.5)
        w = jax.random.uniform(kw, (prev, h), jnp.float32, -bound, bound)
        b = jax.random.uniform(kb, (1, h), jnp.float32, -bound, bound)
        gamma = jax.random.uniform(kg, (1, h), jnp.float32, 0.5, 1.5)
        beta = jax.random.normal(kbe, (1, h), jnp.float32) * 0.1
        run_mean = jax.random.normal(km, (1, h), jnp.float32) * 0.5
        run_var = jax.random.uniform(kv, (1, h), jnp.float32, 0.5, 1.5)
        params += [w, b, gamma, beta, run_mean, run_var]
        prev = h
    key, kw, kb = jax.random.split(key, 3)
    bound = 1.0 / (prev ** 0.5)
    w_out = jax.random.uniform(kw, (prev, output_size), jnp.float32, -bound, bound)
    b_out = jax.random.uniform(kb, (1, output_size), jnp.float32, -bound, bound)
    params += [w_out, b_out]
    return params


def reference_forward(x, raw_params, num_hidden):
    """Pure-JAX f32 reference reproducing the PyTorch eval-mode forward."""
    h = x
    idx = 0
    for _ in range(num_hidden):
        w, b, g, be, rm, rv = raw_params[idx:idx + 6]
        idx += 6
        h = h @ w + b
        h = jnp.maximum(h, 0.0)
        h = (h - rm) / jnp.sqrt(rv + BN_EPS) * g + be
        # Dropout: identity in eval mode
    w, b = raw_params[idx:idx + 2]
    return jax.nn.sigmoid(h @ w + b)


if __name__ == "__main__":
    input_size = 32
    hidden_sizes = (64, 32)
    output_size = 16
    num_hidden = len(hidden_sizes)

    key = jax.random.PRNGKey(0)
    key, kx = jax.random.split(key)
    raw_params = init_params(key, input_size, hidden_sizes, output_size)

    # --- small batch, f32 matmul operands: tight numerical check --------------
    x_small = jax.random.normal(kx, (8, input_size), jnp.float32)
    p_f32, out_padded = prepare_params(raw_params, num_hidden, output_size,
                                       matmul_dtype=jnp.float32)
    out = emotion_recommender_forward(x_small, p_f32, num_hidden, output_size,
                                      out_padded)
    out = jax.block_until_ready(out)
    ref = reference_forward(x_small, raw_params, num_hidden)
    assert out.shape == (8, output_size)
    assert jnp.allclose(out, ref, atol=2e-3, rtol=2e-3)

    # --- larger, non-aligned batch, bf16 matmul operands (v6e/v7x MXU path),
    #     multi-step parallel grid ----------------------------------------------
    key, kx2 = jax.random.split(key)
    x_big = jax.random.normal(kx2, (200, input_size), jnp.float32)
    p_bf16, out_padded = prepare_params(raw_params, num_hidden, output_size,
                                        matmul_dtype=jnp.bfloat16)
    out_big = emotion_recommender_forward(x_big, p_bf16, num_hidden, output_size,
                                          out_padded, block_rows=128)
    out_big = jax.block_until_ready(out_big)
    ref_big = reference_forward(x_big, raw_params, num_hidden)
    assert out_big.shape == (200, output_size)
    assert jnp.allclose(out_big, ref_big, atol=2e-2, rtol=2e-2)

    print("KERNEL_OK")
</pallas_src>

<mosaic_0001>
module attributes {stable_mosaic.version = 11 : i64} {
  func.func @_mlp_kernel(%arg0: i32, %arg1: memref<8x32xf32, #tpu.memory_space<vmem>>, %arg2: memref<32x64xf32, #tpu.memory_space<vmem>>, %arg3: memref<1x64xf32, #tpu.memory_space<vmem>>, %arg4: memref<64x32xf32, #tpu.memory_space<vmem>>, %arg5: memref<1x32xf32, #tpu.memory_space<vmem>>, %arg6: memref<32x128xf32, #tpu.memory_space<vmem>>, %arg7: memref<1x128xf32, #tpu.memory_space<vmem>>, %arg8: memref<8x128xf32, #tpu.memory_space<vmem>>) attributes {dimension_semantics = [#tpu.dimension_semantics<parallel>], iteration_bounds = array<i64: 1>, scalar_prefetch = 0 : i64, scratch_operands = 0 : i64, tpu.core_type = #tpu.core_type<tc>, window_params = [{transform_indices = @transform_0, window_bounds = array<i64: 8, 32>}, {pipeline_mode = #tpu.pipeline_mode<synchronous>, transform_indices = @transform_1, window_bounds = array<i64: 32, 64>}, {pipeline_mode = #tpu.pipeline_mode<synchronous>, transform_indices = @transform_2, window_bounds = array<i64: 1, 64>}, {pipeline_mode = #tpu.pipeline_mode<synchronous>, transform_indices = @transform_3, window_bounds = array<i64: 64, 32>}, {pipeline_mode = #tpu.pipeline_mode<synchronous>, transform_indices = @transform_4, window_bounds = array<i64: 1, 32>}, {pipeline_mode = #tpu.pipeline_mode<synchronous>, transform_indices = @transform_5, window_bounds = array<i64: 32, 128>}, {pipeline_mode = #tpu.pipeline_mode<synchronous>, transform_indices = @transform_6, window_bounds = array<i64: 1, 128>}, {transform_indices = @transform_7, window_bounds = array<i64: 8, 128>}]} {
    %c0 = arith.constant 0 : index
    %c0_0 = arith.constant 0 : index
    %0 = vector.load %arg1[%c0, %c0_0] : memref<8x32xf32, #tpu.memory_space<vmem>>, vector<8x32xf32>
    %c0_1 = arith.constant 0 : index
    %c0_2 = arith.constant 0 : index
    %1 = vector.load %arg2[%c0_1, %c0_2] : memref<32x64xf32, #tpu.memory_space<vmem>>, vector<32x64xf32>
    %cst = arith.constant dense<0.000000e+00> : vector<8x64xf32>
    %2 = tpu.matmul %0, %1, %cst {dimension_numbers = #tpu.dot_dimension_numbers<[1], [0], [0], [1], [0, 0, 1, 1], [], []>} : vector<8x32xf32>, vector<32x64xf32>, vector<8x64xf32> -> vector<8x64xf32>
    %c0_3 = arith.constant 0 : index
    %c0_4 = arith.constant 0 : index
    %3 = vector.load %arg3[%c0_3, %c0_4] : memref<1x64xf32, #tpu.memory_space<vmem>>, vector<1x64xf32>
    %4 = vector.broadcast %3 : vector<1x64xf32> to vector<8x64xf32>
    %5 = arith.addf %2, %4 : vector<8x64xf32>
    %cst_5 = arith.constant 0.000000e+00 : f32
    %6 = vector.broadcast %cst_5 : f32 to vector<8x64xf32>
    %7 = arith.maximumf %5, %6 : vector<8x64xf32>
    %c0_6 = arith.constant 0 : index
    %c0_7 = arith.constant 0 : index
    %8 = vector.load %arg4[%c0_6, %c0_7] : memref<64x32xf32, #tpu.memory_space<vmem>>, vector<64x32xf32>
    %cst_8 = arith.constant dense<0.000000e+00> : vector<8x32xf32>
    %9 = tpu.matmul %7, %8, %cst_8 {dimension_numbers = #tpu.dot_dimension_numbers<[1], [0], [0], [1], [0, 0, 1, 1], [], []>} : vector<8x64xf32>, vector<64x32xf32>, vector<8x32xf32> -> vector<8x32xf32>
    %c0_9 = arith.constant 0 : index
    %c0_10 = arith.constant 0 : index
    %10 = vector.load %arg5[%c0_9, %c0_10] : memref<1x32xf32, #tpu.memory_space<vmem>>, vector<1x32xf32>
    %11 = vector.broadcast %10 : vector<1x32xf32> to vector<8x32xf32>
    %12 = arith.addf %9, %11 : vector<8x32xf32>
    %cst_11 = arith.constant 0.000000e+00 : f32
    %13 = vector.broadcast %cst_11 : f32 to vector<8x32xf32>
    %14 = arith.maximumf %12, %13 : vector<8x32xf32>
    %c0_12 = arith.constant 0 : index
    %c0_13 = arith.constant 0 : index
    %15 = vector.load %arg6[%c0_12, %c0_13] : memref<32x128xf32, #tpu.memory_space<vmem>>, vector<32x128xf32>
    %cst_14 = arith.constant dense<0.000000e+00> : vector<8x128xf32>
    %16 = tpu.matmul %14, %15, %cst_14 {dimension_numbers = #tpu.dot_dimension_numbers<[1], [0], [0], [1], [0, 0, 1, 1], [], []>} : vector<8x32xf32>, vector<32x128xf32>, vector<8x128xf32> -> vector<8x128xf32>
    %c0_15 = arith.constant 0 : index
    %c0_16 = arith.constant 0 : index
    %17 = vector.load %arg7[%c0_15, %c0_16] : memref<1x128xf32, #tpu.memory_space<vmem>>, vector<1x128xf32>
    %18 = vector.broadcast %17 : vector<1x128xf32> to vector<8x128xf32>
    %19 = arith.addf %16, %18 : vector<8x128xf32>
    %cst_17 = arith.constant 0.000000e+00 : f32
    %20 = vector.broadcast %cst_17 : f32 to vector<8x128xf32>
    %21 = arith.subf %20, %19 : vector<8x128xf32>
    %22 = math.exp %21 : vector<8x128xf32>
    %cst_18 = arith.constant 1.000000e+00 : f32
    %23 = vector.broadcast %cst_18 : f32 to vector<8x128xf32>
    %24 = arith.addf %23, %22 : vector<8x128xf32>
    %25 = tpu.reciprocal %24 {approx = true} : vector<8x128xf32> -> vector<8x128xf32>
    %c0_19 = arith.constant 0 : index
    %c0_20 = arith.constant 0 : index
    %26 = vector.load %arg8[%c0_19, %c0_20] : memref<8x128xf32, #tpu.memory_space<vmem>>, vector<8x128xf32>
    tpu.vector_store %arg8[%c0_19, %c0_20], %25 {strides = array<i32>} : memref<8x128xf32, #tpu.memory_space<vmem>>, vector<8x128xf32>,
    return
  }
  func.func @transform_0(%arg0: i32) -> (i32, i32) {
    %c0_i32 = arith.constant 0 : i32
    %c0_i32_0 = arith.constant 0 : i32
    return %arg0, %c0_i32 : i32, i32
  }
  func.func @transform_1(%arg0: i32) -> (i32, i32) {
    %c0_i32 = arith.constant 0 : i32
    %c0_i32_0 = arith.constant 0 : i32
    %c0_i32_1 = arith.constant 0 : i32
    return %c0_i32, %c0_i32_0 : i32, i32
  }
  func.func @transform_2(%arg0: i32) -> (i32, i32) {
    %c0_i32 = arith.constant 0 : i32
    %c0_i32_0 = arith.constant 0 : i32
    %c0_i32_1 = arith.constant 0 : i32
    return %c0_i32, %c0_i32_0 : i32, i32
  }
  func.func @transform_3(%arg0: i32) -> (i32, i32) {
    %c0_i32 = arith.constant 0 : i32
    %c0_i32_0 = arith.constant 0 : i32
    %c0_i32_1 = arith.constant 0 : i32
    return %c0_i32, %c0_i32_0 : i32, i32
  }
  func.func @transform_4(%arg0: i32) -> (i32, i32) {
    %c0_i32 = arith.constant 0 : i32
    %c0_i32_0 = arith.constant 0 : i32
    %c0_i32_1 = arith.constant 0 : i32
    return %c0_i32, %c0_i32_0 : i32, i32
  }
  func.func @transform_5(%arg0: i32) -> (i32, i32) {
    %c0_i32 = arith.constant 0 : i32
    %c0_i32_0 = arith.constant 0 : i32
    %c0_i32_1 = arith.constant 0 : i32
    return %c0_i32, %c0_i32_0 : i32, i32
  }
  func.func @transform_6(%arg0: i32) -> (i32, i32) {
    %c0_i32 = arith.constant 0 : i32
    %c0_i32_0 = arith.constant 0 : i32
    %c0_i32_1 = arith.constant 0 : i32
    return %c0_i32, %c0_i32_0 : i32, i32
  }
  func.func @transform_7(%arg0: i32) -> (i32, i32) {
    %c0_i32 = arith.constant 0 : i32
    %c0_i32_0 = arith.constant 0 : i32
    return %arg0, %c0_i32 : i32, i32
  }
}

</mosaic_0001>

<llo_original>
// kernel: tpu_custom_call.1
$region0: #{tpu_custom_call.1}
  #allocation0 [shape = 'u32[]', space=smem, size = 0x4, offset = 0x4, fixed_abs, tag = 'smem constant byte address 0x4 - core index']
  #allocation1 [shape = 'u32[72,128]{1,0:T(1,128)}', space=vmem, size = 0x9000, scoped, tag = 'internal scratch']
  %s0 = inlined_call_operand.vmem [shape: f32[8,32], index: 0, kind: input, shape index: {}]
  %s1 = inlined_call_operand.vmem [shape: f32[32,64], index: 1, kind: input, shape index: {}]
  %s2 = inlined_call_operand.vmem [shape: f32[1,64], index: 2, kind: input, shape index: {}]
  %s3 = inlined_call_operand.vmem [shape: f32[64,32], index: 3, kind: input, shape index: {}]
  %s4 = inlined_call_operand.vmem [shape: f32[1,32], index: 4, kind: input, shape index: {}]
  %s5 = inlined_call_operand.vmem [shape: f32[32,128], index: 5, kind: input, shape index: {}]
  %s6 = inlined_call_operand.vmem [shape: f32[1,128], index: 6, kind: input, shape index: {}]
  %s7 = inlined_call_operand.hbm [shape: f32[8,128], index: 7, kind: output, shape index: {}]
  %s8 = sld [smem:[#allocation0]]
  $region38: #{tpu_custom_call.1} parent=0
    _
  %s10 = ssub.s32 1, %s8
  %s11 = scalar_select 0, %s10, %s8
  $region1: #{tpu_custom_call.1} parent=0
    #allocation2 [shape = 'u8[4096]{0}', space=vmem, size = 0x1000, scoped, tag = 'output window, operand 0, single buffered']
    #allocation3 [shape = 's32[1]{0}', space=sflag, size = 0x4, scoped, tag = 'scoped memory for tpu_custom_call.1']
    %12 = vsyncpa [#allocation3], 0
    // Predicated region
    $region2: #{tpu_custom_call.1} parent=1 // pred_check
      _
    $region3: #{tpu_custom_call.1} parent=1 // pred_check_branch
      %14 = sbr.rel (0) target = $region5
    $region4: #{tpu_custom_call.1} parent=1 // pred_region
      _
    $region5: #{tpu_custom_call.1} parent=1 // pred_fallthru
      _
    // Predicated region
    $region6: #{tpu_custom_call.1} parent=1 // pred_check
      _
    $region7: #{tpu_custom_call.1} parent=1 // pred_check_branch
      %16 = sbr.rel (0) target = $region9
    $region8: #{tpu_custom_call.1} parent=1 // pred_region
      _
    $region9: #{tpu_custom_call.1} parent=1 // pred_fallthru
      _
    // Predicated region
    $region10: #{tpu_custom_call.1} parent=1 // pred_check
      _
    $region11: #{tpu_custom_call.1} parent=1 // pred_check_branch
      %18 = sbr.rel (0) target = $region13
    $region12: #{tpu_custom_call.1} parent=1 // pred_region
      _
    $region13: #{tpu_custom_call.1} parent=1 // pred_fallthru
      _
    // Predicated region
    $region14: #{tpu_custom_call.1} parent=1 // pred_check
      _
    $region15: #{tpu_custom_call.1} parent=1 // pred_check_branch
      %20 = sbr.rel (0) target = $region17
    $region16: #{tpu_custom_call.1} parent=1 // pred_region
      _
    $region17: #{tpu_custom_call.1} parent=1 // pred_fallthru
      _
    // Predicated region
    $region18: #{tpu_custom_call.1} parent=1 // pred_check
      _
    $region19: #{tpu_custom_call.1} parent=1 // pred_check_branch
      %22 = sbr.rel (0) target = $region21
    $region20: #{tpu_custom_call.1} parent=1 // pred_region
      _
    $region21: #{tpu_custom_call.1} parent=1 // pred_fallthru
      _
    // Predicated region
    $region22: #{tpu_custom_call.1} parent=1 // pred_check
      _
    $region23: #{tpu_custom_call.1} parent=1 // pred_check_branch
      %24 = sbr.rel (0) target = $region25
    $region24: #{tpu_custom_call.1} parent=1 // pred_region
      _
    $region25: #{tpu_custom_call.1} parent=1 // pred_fallthru
      _
    // Predicated region
    $region26: #{tpu_custom_call.1} parent=1 // pred_check
      _
    $region27: #{tpu_custom_call.1} parent=1 // pred_check_branch
      %26 = sbr.rel (0) target = $region29
    $region28: #{tpu_custom_call.1} parent=1 // pred_region
      _
    $region29: #{tpu_custom_call.1} parent=1 // pred_fallthru
      _
    %v27 = vld [vmem:[%s0] sm:$0xff]
    %v28 = vld [vmem:[%s1] sm:$0xff]
    %v29 = vld [vmem:[%s1 + $0x8] sm:$0xff]
    %v30 = vld [vmem:[%s1 + $0x10] sm:$0xff]
    %v31 = vld [vmem:[%s1 + $0x18] sm:$0xff]
    %v32 = vld [vmem:[%s2] sm:$0x1]
    %v34 = vperm.slane %v32, 0
    %vm36 = vcmask 261120
    %v38 = vsel %vm36, %v27, 0
    %40 = vmatpush.msra.mxu0 0.0
    %41 = vmatpush.msra.mxu0 0.0
    %42 = vmatpush.msra.mxu0 0.0
    %43 = vmatpush.msra.mxu0 0.0
    %44 = vmatpush.msra.mxu0 0.0
    %45 = vmatpush.msra.mxu0 0.0
    %46 = vmatpush.msra.mxu0 0.0
    %47 = vmatpush.msra.mxu0 0.0
    %48 = vmatpush.msra.mxu0 0.0
    %49 = vmatpush.msra.mxu0 0.0
    %50 = vmatpush.msra.mxu0 0.0
    %51 = vmatpush.msra.mxu0 0.0
    %52 = vmatpush.msra.mxu0 %v31
    %53 = vmatpush.msra.mxu0 %v30
    %54 = vmatpush.msra.mxu0 %v29
    %55 = vmatpush.msra.mxu0 %v28
    %56 = vmatmul.f32.gmra.mxu0 %v38
    %v57 = vpop.f32.mrf.mxu0
    %v58 = vadd.f32 %v34, %v57
    %59 = vdwg.mxu0
    %v60 = vmax.f32 %v58, 0.0
    %v61 = vld [vmem:[%s3] sm:$0xff]
    %v62 = vld [vmem:[%s3 + $0x8] sm:$0xff]
    %v63 = vld [vmem:[%s3 + $0x10] sm:$0xff]
    %v64 = vld [vmem:[%s3 + $0x18] sm:$0xff]
    %v65 = vld [vmem:[%s3 + $0x20] sm:$0xff]
    %v66 = vld [vmem:[%s3 + $0x28] sm:$0xff]
    %v67 = vld [vmem:[%s3 + $0x30] sm:$0xff]
    %v68 = vld [vmem:[%s3 + $0x38] sm:$0xff]
    %v69 = vld [vmem:[%s4] sm:$0x1]
    %v71 = vperm.slane %v69, 0
    %vm73 = vcmask 523264
    %v75 = vsel %vm73, %v60, 0
    %77 = vmatpush.msra.mxu0 0.0
    %78 = vmatpush.msra.mxu0 0.0
    %79 = vmatpush.msra.mxu0 0.0
    %80 = vmatpush.msra.mxu0 0.0
    %81 = vmatpush.msra.mxu0 0.0
    %82 = vmatpush.msra.mxu0 0.0
    %83 = vmatpush.msra.mxu0 0.0
    %84 = vmatpush.msra.mxu0 0.0
    %85 = vmatpush.msra.mxu0 %v68
    %86 = vmatpush.msra.mxu0 %v67
    %87 = vmatpush.msra.mxu0 %v66
    %88 = vmatpush.msra.mxu0 %v65
    %89 = vmatpush.msra.mxu0 %v64
    %90 = vmatpush.msra.mxu0 %v63
    %91 = vmatpush.msra.mxu0 %v62
    %92 = vmatpush.msra.mxu0 %v61
    %93 = vmatmul.f32.gmra.mxu0 %v75
    %v94 = vpop.f32.mrf.mxu0
    %v95 = vadd.f32 %v71, %v94
    %96 = vdwg.mxu0
    %v97 = vmax.f32 %v95, 0.0
    %v98 = vld [vmem:[%s5] sm:$0xff]
    %v99 = vld [vmem:[%s5 + $0x8] sm:$0xff]
    %v100 = vld [vmem:[%s5 + $0x10] sm:$0xff]
    %v101 = vld [vmem:[%s5 + $0x18] sm:$0xff]
    %v102 = vld [vmem:[%s6] sm:$0x1]
    %v104 = vperm.slane %v102, 0
    %v107 = vsel %vm36, %v97, 0
    %109 = vmatpush.msra.mxu0 0.0
    %110 = vmatpush.msra.mxu0 0.0
    %111 = vmatpush.msra.mxu0 0.0
    %112 = vmatpush.msra.mxu0 0.0
    %113 = vmatpush.msra.mxu0 0.0
    %114 = vmatpush.msra.mxu0 0.0
    %115 = vmatpush.msra.mxu0 0.0
    %116 = vmatpush.msra.mxu0 0.0
    %117 = vmatpush.msra.mxu0 0.0
    %118 = vmatpush.msra.mxu0 0.0
    %119 = vmatpush.msra.mxu0 0.0
    %120 = vmatpush.msra.mxu0 0.0
    %121 = vmatpush.msra.mxu0 %v101
    %122 = vmatpush.msra.mxu0 %v100
    %123 = vmatpush.msra.mxu0 %v99
    %124 = vmatpush.msra.mxu0 %v98
    %125 = vmatmul.f32.gmra.mxu0 %v107
    %v126 = vpop.f32.mrf.mxu0
    %v127 = vadd.f32 %v104, %v126
    %128 = vdwg.mxu0
    %v129 = vsub.f32 0.0, %v127
    %v130 = vmul.f32 %v129, 1.442695
    %v131 = vpow.pop %v130
    %v132 = vadd.f32 %v131, 1.0
    %v133 = vrcp.pop %v132
    %134 = vst [vmem:[#allocation2] sm:$0xff] %v133
    // Predicated region
    $region30: #{tpu_custom_call.1} parent=1 // pred_check
      _
    $region31: #{tpu_custom_call.1} parent=1 // pred_check_branch
      %136 = sbr.rel (0) target = $region33
    $region32: #{tpu_custom_call.1} parent=1 // pred_region
      %138 = vsyncadd [#allocation3], 0
      %s140 = sshll.u32 [#allocation2], 4
      %s141 = int_to_ptr.vmem [resolvable:$true] %s140
      %s142 = sshll.u32 %s7, 4
      %s143 = int_to_ptr.hbm [resolvable:$true] %s142
      %145 = dma.vmem_to_hbm [thread:$0]  %s141, 128, %s143, [#allocation3]
    $region33: #{tpu_custom_call.1} parent=1 // pred_fallthru
      _
    // Predicated region
    $region34: #{tpu_custom_call.1} parent=1 // pred_check
      _
    $region35: #{tpu_custom_call.1} parent=1 // pred_check_branch
      %147 = sbr.rel (0) target = $region37
    $region36: #{tpu_custom_call.1} parent=1 // pred_region
      %149 = dma.done [#allocation3], 128
    $region37: #{tpu_custom_call.1} parent=1 // pred_fallthru
      _
    %150 = vsyncpa [#allocation3], 1

</llo_original>
